<compile_context>
chip_gen: v5e
topology: v5e:2x2
jax: 0.10.0
libtpu: 0.0.40
codegen_flags: <defaults>
</compile_context>

<pallas_src>
import functools

import jax
import jax.numpy as jnp
from jax.experimental import pallas as pl
from jax.experimental.pallas import tpu as pltpu


# ---------------------------------------------------------------------------
# Kernels
# ---------------------------------------------------------------------------
def _quad_conv_roll_kernel(x_ref, out_ref):
    """Lane-aligned path (W % 128 == 0).

    x_ref:   (rb, 2W)  -> lanes [0:W] = even image row, lanes [W:2W] = odd image row.
    out_ref: (rb,  W)  -> interleaved slab: lane 2j = g0[:, j], lane 2j+1 = g1[:, j].
    """
    rows, w2 = x_ref.shape
    w = w2 // 2
    e = x_ref[:, :w]                 # x[n, 2i, :]   (tile-aligned lane slice)
    o = x_ref[:, w:]                 # x[n, 2i+1, :] (tile-aligned lane slice)

    # Bring e[:, j+1] to lane j: one XLU rotate (shift w-1 == shift -1 mod w).
    # The wraparound lands only on the last (odd) lane, overwritten by the select.
    e_nxt = pltpu.roll(e, w - 1, axis=1)

    a = e + e_nxt + o                # even lanes 2j hold g0[:, j]
    lane = jax.lax.broadcasted_iota(jnp.int32, (rows, w), 1)
    out_ref[...] = jnp.where((lane & 1) == 0, a, o)


def _quad_conv_mxu_kernel(x_ref, m_ref, out_ref):
    """Small / unaligned-W path: one MXU matmul with a constant 0/1 mixing matrix.

    x_ref:   (rb, 2W), m_ref: (2W, W), out_ref: (rb, W) = [g0 | g1] side by side.
    """
    out_ref[...] = jnp.dot(
        x_ref[...], m_ref[...], preferred_element_type=jnp.float32
    ).astype(out_ref.dtype)


# ---------------------------------------------------------------------------
# Wrapper
# ---------------------------------------------------------------------------
def _mix_matrix(w, dtype):
    """(2W, W) 0/1 matrix M such that row @ M = [g0 | g1] for a packed row pair."""
    wo = w // 2
    r = jnp.arange(2 * w, dtype=jnp.int32)[:, None]   # input lane u
    c = jnp.arange(w, dtype=jnp.int32)[None, :]       # output column v
    g0 = (c < wo) & ((r == 2 * c) | (r == 2 * c + 1) | (r == w + 2 * c))
    g1 = (c >= wo) & (r == w + 2 * (c - wo) + 1)
    return (g0 | g1).astype(dtype)


def _choose_row_block(n_rows, row_bytes, max_block_bytes):
    """Rows per block: multiple of 8, ~max_block_bytes per input block."""
    rows = (max_block_bytes // max(1, row_bytes)) // 8 * 8
    rows = max(8, rows)
    return n_rows if n_rows <= rows else rows


@functools.partial(jax.jit, static_argnames=("max_block_bytes",))
def quad_convs(x, *, max_block_bytes=2 * 1024 * 1024):
    """x: (N, 1, H, W) -> (g0, g1), each (N, 1, H//2, W//2)."""
    n, c, h, w = x.shape
    assert c == 1 and h % 2 == 0 and w % 2 == 0
    ho, wo = h // 2, w // 2
    m2 = n * ho                                   # one flat row per output row
    x2 = x.reshape(m2, 2 * w)                     # free contiguous reshape

    rb = _choose_row_block(m2, 2 * w * x.dtype.itemsize, max_block_bytes)
    grid = (pl.cdiv(m2, rb),)                     # partial trailing block is masked
    cparams = pltpu.CompilerParams(
        dimension_semantics=("parallel",),        # megacore-shardable row axis
        vmem_limit_bytes=32 * 1024 * 1024,
    )
    out_shape = jax.ShapeDtypeStruct((m2, w), x.dtype)

    if w % 128 == 0:
        slab = pl.pallas_call(
            _quad_conv_roll_kernel,
            out_shape=out_shape,
            grid_spec=pltpu.PrefetchScalarGridSpec(
                num_scalar_prefetch=0,
                grid=grid,
                in_specs=[pl.BlockSpec((rb, 2 * w), lambda i: (i, 0))],
                out_specs=pl.BlockSpec((rb, w), lambda i: (i, 0)),
            ),
            compiler_params=cparams,
        )(x2)
        # Cheap XLA de-interleave of the lane-dense slab (output-sized data only).
        slab4 = slab.reshape(n, ho, wo, 2)
        g0 = slab4[..., 0].reshape(n, 1, ho, wo)
        g1 = slab4[..., 1].reshape(n, 1, ho, wo)
    else:
        mix = _mix_matrix(w, x.dtype)
        slab = pl.pallas_call(
            _quad_conv_mxu_kernel,
            out_shape=out_shape,
            grid_spec=pltpu.PrefetchScalarGridSpec(
                num_scalar_prefetch=0,
                grid=grid,
                in_specs=[pl.BlockSpec((rb, 2 * w), lambda i: (i, 0)),
                          pl.BlockSpec((2 * w, w), lambda i: (0, 0))],
                out_specs=pl.BlockSpec((rb, w), lambda i: (i, 0)),
            ),
            compiler_params=cparams,
        )(x2, mix)
        g0 = slab[:, :wo].reshape(n, 1, ho, wo)
        g1 = slab[:, wo:].reshape(n, 1, ho, wo)
    return g0, g1


_GROUP_BYTES_LIMIT = 8 * 1024 * 1024


def h_module_forward(x_list):
    """Mirrors h_module.forward: [(x, name)] -> [(g0,'0'+name), (g1,'1'+name), ...].

    Small tensors that share (C, H, W, dtype) are stacked along the batch axis and run
    through a single pallas_call; large tensors run individually (no concat copy).
    """
    groups = {}
    for idx, (x, _) in enumerate(x_list):
        key = (x.shape[1], x.shape[2], x.shape[3], x.dtype)
        groups.setdefault(key, []).append(idx)

    per_input = [None] * len(x_list)
    for idxs in groups.values():
        xs = [x_list[i][0] for i in idxs]
        total_bytes = sum(int(x.size) * x.dtype.itemsize for x in xs)
        if len(xs) > 1 and total_bytes <= _GROUP_BYTES_LIMIT:
            stacked = jnp.concatenate(xs, axis=0)
            g0, g1 = quad_convs(stacked)
            off = 0
            for i, x in zip(idxs, xs):
                nb = int(x.shape[0])
                per_input[i] = (g0[off:off + nb], g1[off:off + nb])
                off += nb
        else:
            for i, x in zip(idxs, xs):
                per_input[i] = quad_convs(x)

    res = []
    for (x, name), (g0, g1) in zip(x_list, per_input):
        res.append((g0, '0' + name))
        res.append((g1, '1' + name))
    return res


def _reference(x):
    # Pure-JAX reference of the two convolutions.
    g0 = x[:, :, 0::2, 0::2] + x[:, :, 0::2, 1::2] + x[:, :, 1::2, 0::2]
    g1 = x[:, :, 1::2, 1::2]
    return g0, g1


if __name__ == "__main__":
    key = jax.random.PRNGKey(0)
    k1, k2, k3, k4 = jax.random.split(key, 4)
    xa = jax.random.normal(k1, (2, 1, 16, 16), dtype=jnp.float32)
    xb = jax.random.normal(k2, (2, 1, 16, 16), dtype=jnp.float32)
    xc = jax.random.normal(k3, (1, 1, 8, 32), dtype=jnp.float32)   # second shape group
    x_list = [(xa, "a"), (xb, "b"), (xc, "c")]

    out = h_module_forward(x_list)
    for g, _ in out:
        jax.block_until_ready(g)

    # Correctness vs pure-JAX reference, names and order preserved.
    refs = {}
    for x, name in x_list:
        refs['0' + name], refs['1' + name] = _reference(x)
    assert [name for _, name in out] == ['0a', '1a', '0b', '1b', '0c', '1c']
    for g, name in out:
        assert g.shape == refs[name].shape, (name, g.shape, refs[name].shape)
        assert jnp.allclose(g, refs[name], atol=1e-6), name

    # Row tiling: >1 grid step plus a partial trailing block on the MXU path
    # (40 rows, rb=16 -> blocks of 16/16/8).
    xd = jax.random.normal(k4, (5, 1, 16, 16), dtype=jnp.float32)
    g0d, g1d = quad_convs(xd, max_block_bytes=2048)
    jax.block_until_ready(g0d)
    r0d, r1d = _reference(xd)
    assert jnp.allclose(g0d, r0d, atol=1e-6)
    assert jnp.allclose(g1d, r1d, atol=1e-6)

    # Lane-aligned (roll) path: single block ...
    xe = jax.random.normal(k1, (2, 1, 8, 128), dtype=jnp.float32)
    g0e, g1e = quad_convs(xe)
    r0e, r1e = _reference(xe)
    assert jnp.allclose(g0e, r0e, atol=1e-6)
    assert jnp.allclose(g1e, r1e, atol=1e-6)

    # ... and multi-block row tiling.
    xf = jax.random.normal(k2, (2, 1, 32, 128), dtype=jnp.float32)
    g0f, g1f = quad_convs(xf, max_block_bytes=16 * 1024)
    r0f, r1f = _reference(xf)
    assert jnp.allclose(g0f, r0f, atol=1e-6)
    assert jnp.allclose(g1f, r1f, atol=1e-6)

    print("KERNEL_OK")
</pallas_src>

<mosaic_0001>
module attributes {stable_mosaic.version = 11 : i64} {
  func.func @_quad_conv_mxu_kernel(%arg0: i32, %arg1: memref<32x32xf32, #tpu.memory_space<vmem>>, %arg2: memref<32x16xf32, #tpu.memory_space<vmem>>, %arg3: memref<32x16xf32, #tpu.memory_space<vmem>>) attributes {dimension_semantics = [#tpu.dimension_semantics<parallel>], iteration_bounds = array<i64: 1>, scalar_prefetch = 0 : i64, scratch_operands = 0 : i64, tpu.core_type = #tpu.core_type<tc>, window_params = [{transform_indices = @transform_0, window_bounds = array<i64: 32, 32>}, {pipeline_mode = #tpu.pipeline_mode<synchronous>, transform_indices = @transform_1, window_bounds = array<i64: 32, 16>}, {transform_indices = @transform_2, window_bounds = array<i64: 32, 16>}]} {
    %c0 = arith.constant 0 : index
    %c0_0 = arith.constant 0 : index
    %0 = vector.load %arg1[%c0, %c0_0] : memref<32x32xf32, #tpu.memory_space<vmem>>, vector<32x32xf32>
    %c0_1 = arith.constant 0 : index
    %c0_2 = arith.constant 0 : index
    %1 = vector.load %arg2[%c0_1, %c0_2] : memref<32x16xf32, #tpu.memory_space<vmem>>, vector<32x16xf32>
    %cst = arith.constant dense<0.000000e+00> : vector<32x16xf32>
    %2 = tpu.matmul %0, %1, %cst {dimension_numbers = #tpu.dot_dimension_numbers<[1], [0], [0], [1], [0, 0, 1, 1], [], []>} : vector<32x32xf32>, vector<32x16xf32>, vector<32x16xf32> -> vector<32x16xf32>
    %c0_3 = arith.constant 0 : index
    %c0_4 = arith.constant 0 : index
    %3 = vector.load %arg3[%c0_3, %c0_4] : memref<32x16xf32, #tpu.memory_space<vmem>>, vector<32x16xf32>
    tpu.vector_store %arg3[%c0_3, %c0_4], %2 {strides = array<i32>} : memref<32x16xf32, #tpu.memory_space<vmem>>, vector<32x16xf32>,
    return
  }
  func.func @transform_0(%arg0: i32) -> (i32, i32) {
    %c0_i32 = arith.constant 0 : i32
    %c0_i32_0 = arith.constant 0 : i32
    return %arg0, %c0_i32 : i32, i32
  }
  func.func @transform_1(%arg0: i32) -> (i32, i32) {
    %c0_i32 = arith.constant 0 : i32
    %c0_i32_0 = arith.constant 0 : i32
    %c0_i32_1 = arith.constant 0 : i32
    return %c0_i32, %c0_i32_0 : i32, i32
  }
  func.func @transform_2(%arg0: i32) -> (i32, i32) {
    %c0_i32 = arith.constant 0 : i32
    %c0_i32_0 = arith.constant 0 : i32
    return %arg0, %c0_i32 : i32, i32
  }
}

</mosaic_0001>

<llo_original>
// kernel: quad_convs.1
$region0: #{quad_convs.1}
  #allocation0 [shape = 'u32[]', space=smem, size = 0x4, offset = 0x4, fixed_abs, tag = 'smem constant byte address 0x4 - core index']
  #allocation1 [shape = 'u32[72,128]{1,0:T(1,128)}', space=vmem, size = 0x9000, scoped, tag = 'internal scratch']
  %s0 = inlined_call_operand.vmem [shape: f32[32,32], index: 0, kind: input, shape index: {}]
  %s1 = inlined_call_operand.vmem [shape: f32[32,16], index: 1, kind: input, shape index: {}]
  %s2 = inlined_call_operand.vmem [shape: f32[32,16], index: 2, kind: output, shape index: {}]
  %s3 = sld [smem:[#allocation0]]
  $region18: #{quad_convs.1} parent=0
    _
  %s5 = ssub.s32 1, %s3
  %s6 = scalar_select 0, %s5, %s3
  // Predicated region
  $region2: #{quad_convs.1} parent=0 // pred_check
    _
  $region3: #{quad_convs.1} parent=0 // pred_check_branch
    %8 = sbr.rel (0) target = $region5
  $region4: #{quad_convs.1} parent=0 // pred_region
    _
  $region5: #{quad_convs.1} parent=0 // pred_fallthru
    _
  // Predicated region
  $region6: #{quad_convs.1} parent=0 // pred_check
    _
  $region7: #{quad_convs.1} parent=0 // pred_check_branch
    %10 = sbr.rel (0) target = $region9
  $region8: #{quad_convs.1} parent=0 // pred_region
    _
  $region9: #{quad_convs.1} parent=0 // pred_fallthru
    _
  %v11 = vld [vmem:[%s0] sm:$0xff]
  %v12 = vld [vmem:[%s0 + $0x8] sm:$0xff]
  %v13 = vld [vmem:[%s0 + $0x10] sm:$0xff]
  %v14 = vld [vmem:[%s0 + $0x18] sm:$0xff]
  %v15 = vld [vmem:[%s1] sm:$0xff]
  %v16 = vld [vmem:[%s1 + $0x8] sm:$0xff]
  %v17 = vld [vmem:[%s1 + $0x10] sm:$0xff]
  %v18 = vld [vmem:[%s1 + $0x18] sm:$0xff]
  %vm19 = vcmask 261120
  %v21 = vsel %vm19, %v11, 0
  %v24 = vsel %vm19, %v12, 0
  %v27 = vsel %vm19, %v13, 0
  %v30 = vsel %vm19, %v14, 0
  %32 = vmatpush.msra.mxu0 0.0
  %33 = vmatpush.msra.mxu0 0.0
  %34 = vmatpush.msra.mxu0 0.0
  %35 = vmatpush.msra.mxu0 0.0
  %36 = vmatpush.msra.mxu0 0.0
  %37 = vmatpush.msra.mxu0 0.0
  %38 = vmatpush.msra.mxu0 0.0
  %39 = vmatpush.msra.mxu0 0.0
  %40 = vmatpush.msra.mxu0 0.0
  %41 = vmatpush.msra.mxu0 0.0
  %42 = vmatpush.msra.mxu0 0.0
  %43 = vmatpush.msra.mxu0 0.0
  %44 = vmatpush.msra.mxu0 %v18
  %45 = vmatpush.msra.mxu0 %v17
  %46 = vmatpush.msra.mxu0 %v16
  %47 = vmatpush.msra.mxu0 %v15
  %48 = vmatmul.f32.gmra.mxu0 %v21
  %v49 = vpop.f32.mrf.mxu0
  %v50 = vadd.f32 0.0, %v49
  %51 = vmatmul.f32.gmra.mxu0 %v24
  %v52 = vpop.f32.mrf.mxu0
  %v53 = vadd.f32 0.0, %v52
  %54 = vmatmul.f32.gmra.mxu0 %v27
  %v55 = vpop.f32.mrf.mxu0
  %v56 = vadd.f32 0.0, %v55
  %57 = vmatmul.f32.gmra.mxu0 %v30
  %v58 = vpop.f32.mrf.mxu0
  %v59 = vadd.f32 0.0, %v58
  %60 = vdwg.mxu0
  %vm61 = vcmask 130048
  %62 = vst.msk [vmem:[%s2] sm:$0xff] %vm61, %v50
  %63 = vst.msk [vmem:[%s2 + $0x8] sm:$0xff] %vm61, %v53
  %64 = vst.msk [vmem:[%s2 + $0x10] sm:$0xff] %vm61, %v56
  %65 = vst.msk [vmem:[%s2 + $0x18] sm:$0xff] %vm61, %v59
  // Predicated region
  $region10: #{quad_convs.1} parent=0 // pred_check
    _
  $region11: #{quad_convs.1} parent=0 // pred_check_branch
    %67 = sbr.rel (0) target = $region13
  $region12: #{quad_convs.1} parent=0 // pred_region
    _
  $region13: #{quad_convs.1} parent=0 // pred_fallthru
    _
  // Predicated region
  $region14: #{quad_convs.1} parent=0 // pred_check
    _
  $region15: #{quad_convs.1} parent=0 // pred_check_branch
    %69 = sbr.rel (0) target = $region17
  $region16: #{quad_convs.1} parent=0 // pred_region
    _
  $region17: #{quad_convs.1} parent=0 // pred_fallthru
    _

</llo_original>
